<compile_context>
chip_gen: v7x
topology: tpu7x:2x2x1
jax: 0.10.0
libtpu: 0.0.40
codegen_flags: <defaults>
</compile_context>

<pallas_src>
import functools

import jax
import jax.numpy as jnp
from jax.experimental import pallas as pl
from jax.experimental.pallas import tpu as pltpu


def _round_up(n, m):
    return ((n + m - 1) // m) * m


# ~424 B of live f32 activations per batch element (h1 at 64x4 B dominates),
# plus double-buffered x/out tiles (16 B/elem).  16384 rows ~= 7 MiB, which
# fits every generation's default scoped-VMEM limit (v5e: 16 MiB) with
# headroom while amortizing the ~0.35 us per-grid-step overhead ~8x better
# than the old 2048-row tile.
_MAX_TILE_B = 16384


def _choose_tile_b(batch):
    b128 = _round_up(max(batch, 1), 128)
    tile = min(_MAX_TILE_B, b128)          # never pad far past the batch itself
    if b128 >= 4 * 128:
        # Keep >= ~4 grid steps so the "parallel" batch axis gives v7x's two
        # TensorCores work to split, and tail-tile padding waste stays bounded.
        tile = min(tile, _round_up(-(-b128 // 4), 128))
    return max(tile, 128)


def mlp_kernel(x_ref, w1_ref, b1_ref, w2_ref, b2_ref, w3_ref, b3_ref, o_ref,
               *, use_bf16_matmul):
    # Feature-major layout: batch sits on the 128-wide lane axis of every tile.
    x = x_ref[...]                                   # (2, TB)
    w1 = w1_ref[...]                                 # (64, 2)

    # Layer 1 (in=2): a K=2 matmul would feed 2 of 128/256 systolic rows, so
    # do it as two broadcast FMAs on the VPU instead of an MXU pass.
    h1 = w1[:, 0:1] * x[0:1, :] + w1[:, 1:2] * x[1:2, :] + b1_ref[...]
    h1 = jnp.maximum(h1, 0.0)                        # (64, TB) relu

    w2 = w2_ref[...]                                 # (32, 64)
    w3 = w3_ref[...]                                 # (2, 32)
    if use_bf16_matmul:
        # Optional: bf16 operands avoid f32-decomposed MXU passes (3-8x fewer
        # vmatmuls).  Off by default: breaks the 1e-5 accuracy bar (~1e-2 err).
        h1m = h1.astype(jnp.bfloat16)
        w2 = w2.astype(jnp.bfloat16)
        w3 = w3.astype(jnp.bfloat16)
    else:
        h1m = h1

    # Layer 2 (64 -> 32): the only layer worth the MXU; N = TB is lane-dense.
    # TODO(synk): if bundle dumps show the (64, TB) activation as the MXU
    # stationary operand (weight re-push every 256 batch columns on v6e/v7x),
    # restructure so the tiny constant w2 stays stationary; deferred since it
    # needs an in-kernel batch-major transpose and should be measurement-driven.
    h2 = jnp.dot(w2, h1m, preferred_element_type=jnp.float32) + b2_ref[...]
    h2 = jnp.maximum(h2, 0.0)                        # (32, TB) relu
    if use_bf16_matmul:
        h2 = h2.astype(jnp.bfloat16)

    # Layer 3 (32 -> 2): small M but lane-dense N; output lands as (2, TB).
    h3 = jnp.dot(w3, h2, preferred_element_type=jnp.float32) + b3_ref[...]

    # Sigmoid: exp goes to the EUP; exact divide keeps 1e-5 accuracy.
    o_ref[...] = (1.0 / (1.0 + jnp.exp(-h3))).astype(o_ref.dtype)


def _mlp_forward_impl(x, w1, b1, w2, b2, w3, b3, *, tile_b=None,
                      use_bf16_matmul=False):
    """x: (B, 2); w_i: (in, out); b_i: (1, out). Returns (B, 2) like PyTorch."""
    B = x.shape[0]
    if tile_b is None:
        tile_b = _choose_tile_b(B)
    if tile_b % 128 != 0:
        raise ValueError(f"tile_b must be a multiple of 128, got {tile_b}")
    b_pad = _round_up(B, tile_b)

    # Feature-major (lane-dense) relayout.  This lives inside the same jit as
    # the kernel, so XLA fuses/absorbs the pad + transpose instead of paying
    # standalone HBM relayout passes.
    x_t = jnp.pad(x, ((0, b_pad - B), (0, 0))).T     # (2, b_pad)
    w1_t, b1_t = w1.T, b1.T                          # (64, 2), (64, 1)
    w2_t, b2_t = w2.T, b2.T                          # (32, 64), (32, 1)
    w3_t, b3_t = w3.T, b3.T                          # (2, 32),  (2, 1)

    # Weights/biases: full-array block, same block every grid step -> they stay
    # VMEM-resident across the whole grid.
    const = lambda a: pl.BlockSpec(a.shape, lambda i: (0, 0))

    kernel = functools.partial(mlp_kernel, use_bf16_matmul=use_bf16_matmul)

    out_t = pl.pallas_call(
        kernel,
        out_shape=jax.ShapeDtypeStruct((2, b_pad), x.dtype),
        grid=(b_pad // tile_b,),
        in_specs=[
            pl.BlockSpec((2, tile_b), lambda i: (0, i)),   # x tile (lane-dense)
            const(w1_t), const(b1_t),
            const(w2_t), const(b2_t),
            const(w3_t), const(b3_t),
        ],
        out_specs=pl.BlockSpec((2, tile_b), lambda i: (0, i)),
        compiler_params=pltpu.CompilerParams(
            # Batch axis is independent -> v7x's two TensorCores can split it.
            dimension_semantics=("parallel",),
            # Explicit scoped-VMEM limit: ~7 MiB live per max-size tile; 32 MiB
            # is safe on v5e/v6e (128 MiB physical) and v7x (64 MiB physical),
            # and lifts v5e's 16 MiB default out of the way.
            vmem_limit_bytes=32 * 1024 * 1024,
        ),
    )(x_t, w1_t, b1_t, w2_t, b2_t, w3_t, b3_t)

    # Back to PyTorch's (batch, features) layout, dropping the pad rows.
    return out_t.T[:B, :]


# Keep the relayouts + kernel under one jit; tile/precision knobs are static.
mlp_forward = jax.jit(_mlp_forward_impl,
                      static_argnames=("tile_b", "use_bf16_matmul"))


def init_params(key):
    # Deterministic init mimicking PyTorch Linear's U(-1/sqrt(fan_in), 1/sqrt(fan_in)).
    dims = [(2, 64), (64, 32), (32, 2)]
    params = []
    for fan_in, fan_out in dims:
        kw, kb, key = jax.random.split(key, 3)
        bound = 1.0 / (fan_in ** 0.5)
        w = jax.random.uniform(kw, (fan_in, fan_out), jnp.float32, -bound, bound)
        b = jax.random.uniform(kb, (1, fan_out), jnp.float32, -bound, bound)
        params += [w, b]
    return params


if __name__ == "__main__":
    key = jax.random.PRNGKey(0)
    kx, kp = jax.random.split(key)

    batch = 8
    x = jax.random.normal(kx, (batch, 2), dtype=jnp.float32)
    w1, b1, w2, b2, w3, b3 = init_params(kp)

    out = mlp_forward(x, w1, b1, w2, b2, w3, b3)
    out = jax.block_until_ready(out)

    # Reference check in plain JAX (PyTorch semantics: y = x @ W + b).
    ref = jnp.maximum(x @ w1 + b1, 0.0)
    ref = jnp.maximum(ref @ w2 + b2, 0.0)
    ref = jax.nn.sigmoid(ref @ w3 + b3)
    assert out.shape == (batch, 2)
    assert jnp.allclose(out, ref, atol=1e-5), "mismatch vs reference"

    print("KERNEL_OK")
</pallas_src>

<mosaic_0001>
module attributes {stable_mosaic.version = 11 : i64} {
  func.func @mlp_kernel(%arg0: i32, %arg1: memref<2x128xf32, #tpu.memory_space<vmem>>, %arg2: memref<64x2xf32, #tpu.memory_space<vmem>>, %arg3: memref<64x1xf32, #tpu.memory_space<vmem>>, %arg4: memref<32x64xf32, #tpu.memory_space<vmem>>, %arg5: memref<32x1xf32, #tpu.memory_space<vmem>>, %arg6: memref<2x32xf32, #tpu.memory_space<vmem>>, %arg7: memref<2x1xf32, #tpu.memory_space<vmem>>, %arg8: memref<2x128xf32, #tpu.memory_space<vmem>>) attributes {dimension_semantics = [#tpu.dimension_semantics<parallel>], iteration_bounds = array<i64: 1>, scalar_prefetch = 0 : i64, scratch_operands = 0 : i64, tpu.core_type = #tpu.core_type<tc>, window_params = [{transform_indices = @transform_0, window_bounds = array<i64: 2, 128>}, {pipeline_mode = #tpu.pipeline_mode<synchronous>, transform_indices = @transform_1, window_bounds = array<i64: 64, 2>}, {pipeline_mode = #tpu.pipeline_mode<synchronous>, transform_indices = @transform_2, window_bounds = array<i64: 64, 1>}, {pipeline_mode = #tpu.pipeline_mode<synchronous>, transform_indices = @transform_3, window_bounds = array<i64: 32, 64>}, {pipeline_mode = #tpu.pipeline_mode<synchronous>, transform_indices = @transform_4, window_bounds = array<i64: 32, 1>}, {pipeline_mode = #tpu.pipeline_mode<synchronous>, transform_indices = @transform_5, window_bounds = array<i64: 2, 32>}, {pipeline_mode = #tpu.pipeline_mode<synchronous>, transform_indices = @transform_6, window_bounds = array<i64: 2, 1>}, {transform_indices = @transform_7, window_bounds = array<i64: 2, 128>}]} {
    %c0 = arith.constant 0 : index
    %c0_0 = arith.constant 0 : index
    %0 = vector.load %arg1[%c0, %c0_0] : memref<2x128xf32, #tpu.memory_space<vmem>>, vector<2x128xf32>
    %c0_1 = arith.constant 0 : index
    %c0_2 = arith.constant 0 : index
    %1 = vector.load %arg2[%c0_1, %c0_2] : memref<64x2xf32, #tpu.memory_space<vmem>>, vector<64x2xf32>
    %2 = vector.extract_strided_slice %1 {offsets = [0, 0], sizes = [64, 1], strides = [1, 1]} : vector<64x2xf32> to vector<64x1xf32>
    %3 = vector.extract_strided_slice %0 {offsets = [0, 0], sizes = [1, 128], strides = [1, 1]} : vector<2x128xf32> to vector<1x128xf32>
    %4 = vector.broadcast %2 : vector<64x1xf32> to vector<64x128xf32>
    %5 = vector.broadcast %3 : vector<1x128xf32> to vector<64x128xf32>
    %6 = arith.mulf %4, %5 : vector<64x128xf32>
    %7 = vector.extract_strided_slice %1 {offsets = [0, 1], sizes = [64, 1], strides = [1, 1]} : vector<64x2xf32> to vector<64x1xf32>
    %8 = vector.extract_strided_slice %0 {offsets = [1, 0], sizes = [1, 128], strides = [1, 1]} : vector<2x128xf32> to vector<1x128xf32>
    %9 = vector.broadcast %7 : vector<64x1xf32> to vector<64x128xf32>
    %10 = vector.broadcast %8 : vector<1x128xf32> to vector<64x128xf32>
    %11 = arith.mulf %9, %10 : vector<64x128xf32>
    %12 = arith.addf %6, %11 : vector<64x128xf32>
    %c0_3 = arith.constant 0 : index
    %c0_4 = arith.constant 0 : index
    %13 = vector.load %arg3[%c0_3, %c0_4] : memref<64x1xf32, #tpu.memory_space<vmem>>, vector<64x1xf32>
    %14 = vector.broadcast %13 : vector<64x1xf32> to vector<64x128xf32>
    %15 = arith.addf %12, %14 : vector<64x128xf32>
    %cst = arith.constant 0.000000e+00 : f32
    %16 = vector.broadcast %cst : f32 to vector<64x128xf32>
    %17 = arith.maximumf %15, %16 : vector<64x128xf32>
    %c0_5 = arith.constant 0 : index
    %c0_6 = arith.constant 0 : index
    %18 = vector.load %arg4[%c0_5, %c0_6] : memref<32x64xf32, #tpu.memory_space<vmem>>, vector<32x64xf32>
    %c0_7 = arith.constant 0 : index
    %c0_8 = arith.constant 0 : index
    %19 = vector.load %arg6[%c0_7, %c0_8] : memref<2x32xf32, #tpu.memory_space<vmem>>, vector<2x32xf32>
    %cst_9 = arith.constant dense<0.000000e+00> : vector<32x128xf32>
    %20 = tpu.matmul %18, %17, %cst_9 {dimension_numbers = #tpu.dot_dimension_numbers<[1], [0], [0], [1], [0, 0, 1, 1], [], []>} : vector<32x64xf32>, vector<64x128xf32>, vector<32x128xf32> -> vector<32x128xf32>
    %c0_10 = arith.constant 0 : index
    %c0_11 = arith.constant 0 : index
    %21 = vector.load %arg5[%c0_10, %c0_11] : memref<32x1xf32, #tpu.memory_space<vmem>>, vector<32x1xf32>
    %22 = vector.broadcast %21 : vector<32x1xf32> to vector<32x128xf32>
    %23 = arith.addf %20, %22 : vector<32x128xf32>
    %cst_12 = arith.constant 0.000000e+00 : f32
    %24 = vector.broadcast %cst_12 : f32 to vector<32x128xf32>
    %25 = arith.maximumf %23, %24 : vector<32x128xf32>
    %cst_13 = arith.constant dense<0.000000e+00> : vector<2x128xf32>
    %26 = tpu.matmul %19, %25, %cst_13 {dimension_numbers = #tpu.dot_dimension_numbers<[1], [0], [0], [1], [0, 0, 1, 1], [], []>} : vector<2x32xf32>, vector<32x128xf32>, vector<2x128xf32> -> vector<2x128xf32>
    %c0_14 = arith.constant 0 : index
    %c0_15 = arith.constant 0 : index
    %27 = vector.load %arg7[%c0_14, %c0_15] : memref<2x1xf32, #tpu.memory_space<vmem>>, vector<2x1xf32>
    %28 = vector.broadcast %27 : vector<2x1xf32> to vector<2x128xf32>
    %29 = arith.addf %26, %28 : vector<2x128xf32>
    %cst_16 = arith.constant 0.000000e+00 : f32
    %30 = vector.broadcast %cst_16 : f32 to vector<2x128xf32>
    %31 = arith.subf %30, %29 : vector<2x128xf32>
    %32 = math.exp %31 : vector<2x128xf32>
    %cst_17 = arith.constant 1.000000e+00 : f32
    %33 = vector.broadcast %cst_17 : f32 to vector<2x128xf32>
    %34 = arith.addf %33, %32 : vector<2x128xf32>
    %cst_18 = arith.constant 1.000000e+00 : f32
    %35 = vector.broadcast %cst_18 : f32 to vector<2x128xf32>
    %36 = arith.divf %35, %34 : vector<2x128xf32>
    %c0_19 = arith.constant 0 : index
    %c0_20 = arith.constant 0 : index
    %37 = vector.load %arg8[%c0_19, %c0_20] : memref<2x128xf32, #tpu.memory_space<vmem>>, vector<2x128xf32>
    tpu.vector_store %arg8[%c0_19, %c0_20], %36 {strides = array<i32>} : memref<2x128xf32, #tpu.memory_space<vmem>>, vector<2x128xf32>,
    return
  }
  func.func @transform_0(%arg0: i32) -> (i32, i32) {
    %c0_i32 = arith.constant 0 : i32
    %c0_i32_0 = arith.constant 0 : i32
    return %c0_i32, %arg0 : i32, i32
  }
  func.func @transform_1(%arg0: i32) -> (i32, i32) {
    %c0_i32 = arith.constant 0 : i32
    %c0_i32_0 = arith.constant 0 : i32
    %c0_i32_1 = arith.constant 0 : i32
    return %c0_i32, %c0_i32_0 : i32, i32
  }
  func.func @transform_2(%arg0: i32) -> (i32, i32) {
    %c0_i32 = arith.constant 0 : i32
    %c0_i32_0 = arith.constant 0 : i32
    %c0_i32_1 = arith.constant 0 : i32
    return %c0_i32, %c0_i32_0 : i32, i32
  }
  func.func @transform_3(%arg0: i32) -> (i32, i32) {
    %c0_i32 = arith.constant 0 : i32
    %c0_i32_0 = arith.constant 0 : i32
    %c0_i32_1 = arith.constant 0 : i32
    return %c0_i32, %c0_i32_0 : i32, i32
  }
  func.func @transform_4(%arg0: i32) -> (i32, i32) {
    %c0_i32 = arith.constant 0 : i32
    %c0_i32_0 = arith.constant 0 : i32
    %c0_i32_1 = arith.constant 0 : i32
    return %c0_i32, %c0_i32_0 : i32, i32
  }
  func.func @transform_5(%arg0: i32) -> (i32, i32) {
    %c0_i32 = arith.constant 0 : i32
    %c0_i32_0 = arith.constant 0 : i32
    %c0_i32_1 = arith.constant 0 : i32
    return %c0_i32, %c0_i32_0 : i32, i32
  }
  func.func @transform_6(%arg0: i32) -> (i32, i32) {
    %c0_i32 = arith.constant 0 : i32
    %c0_i32_0 = arith.constant 0 : i32
    %c0_i32_1 = arith.constant 0 : i32
    return %c0_i32, %c0_i32_0 : i32, i32
  }
  func.func @transform_7(%arg0: i32) -> (i32, i32) {
    %c0_i32 = arith.constant 0 : i32
    %c0_i32_0 = arith.constant 0 : i32
    return %c0_i32, %arg0 : i32, i32
  }
}

</mosaic_0001>

<llo_original>
// kernel: _mlp_forward_impl.1
$region0: #{_mlp_forward_impl.1}
  #allocation0 [shape = 'u32[]', space=smem, size = 0x4, offset = 0x4, fixed_abs, tag = 'smem constant byte address 0x4 - core index']
  #allocation1 [shape = 'u32[144,128]{1,0:T(1,128)}', space=vmem, size = 0x12000, scoped, tag = 'internal scratch']
  %s0 = inlined_call_operand.vmem [shape: f32[2,128], index: 0, kind: input, shape index: {}]
  %s1 = inlined_call_operand.vmem [shape: f32[64,2], index: 1, kind: input, shape index: {}]
  %s2 = inlined_call_operand.vmem [shape: f32[64,1], index: 2, kind: input, shape index: {}]
  %s3 = inlined_call_operand.vmem [shape: f32[32,64], index: 3, kind: input, shape index: {}]
  %s4 = inlined_call_operand.vmem [shape: f32[32,1], index: 4, kind: input, shape index: {}]
  %s5 = inlined_call_operand.vmem [shape: f32[2,32], index: 5, kind: input, shape index: {}]
  %s6 = inlined_call_operand.vmem [shape: f32[2,1], index: 6, kind: input, shape index: {}]
  %s7 = inlined_call_operand.hbm [shape: f32[2,128], index: 7, kind: output, shape index: {}]
  %s8 = sld [smem:[#allocation0]]
  $region38: #{_mlp_forward_impl.1} parent=0
    _
  %s10 = ssub.s32 1, %s8
  %s11 = scalar_select 0, %s10, %s8
  $region1: #{_mlp_forward_impl.1} parent=0
    #allocation2 [shape = 'u8[1024]{0}', space=vmem, size = 0x400, scoped, tag = 'output window, operand 0, single buffered']
    #allocation3 [shape = 's32[1]{0}', space=sflag, size = 0x4, scoped, tag = 'scoped memory for _mlp_forward_impl.1']
    %12 = vsyncpa [#allocation3], 0
    // Predicated region
    $region2: #{_mlp_forward_impl.1} parent=1 // pred_check
      _
    $region3: #{_mlp_forward_impl.1} parent=1 // pred_check_branch
      %14 = sbr.rel (0) target = $region5
    $region4: #{_mlp_forward_impl.1} parent=1 // pred_region
      _
    $region5: #{_mlp_forward_impl.1} parent=1 // pred_fallthru
      _
    // Predicated region
    $region6: #{_mlp_forward_impl.1} parent=1 // pred_check
      _
    $region7: #{_mlp_forward_impl.1} parent=1 // pred_check_branch
      %16 = sbr.rel (0) target = $region9
    $region8: #{_mlp_forward_impl.1} parent=1 // pred_region
      _
    $region9: #{_mlp_forward_impl.1} parent=1 // pred_fallthru
      _
    // Predicated region
    $region10: #{_mlp_forward_impl.1} parent=1 // pred_check
      _
    $region11: #{_mlp_forward_impl.1} parent=1 // pred_check_branch
      %18 = sbr.rel (0) target = $region13
    $region12: #{_mlp_forward_impl.1} parent=1 // pred_region
      _
    $region13: #{_mlp_forward_impl.1} parent=1 // pred_fallthru
      _
    // Predicated region
    $region14: #{_mlp_forward_impl.1} parent=1 // pred_check
      _
    $region15: #{_mlp_forward_impl.1} parent=1 // pred_check_branch
      %20 = sbr.rel (0) target = $region17
    $region16: #{_mlp_forward_impl.1} parent=1 // pred_region
      _
    $region17: #{_mlp_forward_impl.1} parent=1 // pred_fallthru
      _
    // Predicated region
    $region18: #{_mlp_forward_impl.1} parent=1 // pred_check
      _
    $region19: #{_mlp_forward_impl.1} parent=1 // pred_check_branch
      %22 = sbr.rel (0) target = $region21
    $region20: #{_mlp_forward_impl.1} parent=1 // pred_region
      _
    $region21: #{_mlp_forward_impl.1} parent=1 // pred_fallthru
      _
    // Predicated region
    $region22: #{_mlp_forward_impl.1} parent=1 // pred_check
      _
    $region23: #{_mlp_forward_impl.1} parent=1 // pred_check_branch
      %24 = sbr.rel (0) target = $region25
    $region24: #{_mlp_forward_impl.1} parent=1 // pred_region
      _
    $region25: #{_mlp_forward_impl.1} parent=1 // pred_fallthru
      _
    // Predicated region
    $region26: #{_mlp_forward_impl.1} parent=1 // pred_check
      _
    $region27: #{_mlp_forward_impl.1} parent=1 // pred_check_branch
      %26 = sbr.rel (0) target = $region29
    $region28: #{_mlp_forward_impl.1} parent=1 // pred_region
      _
    $region29: #{_mlp_forward_impl.1} parent=1 // pred_fallthru
      _
    %v27 = vld [vmem:[%s0] sm:$0x3]
    %v28 = vld [vmem:[%s1] sm:$0xff]
    %v29 = vld [vmem:[%s1 + $0x8] sm:$0xff]
    %v30 = vld [vmem:[%s1 + $0x10] sm:$0xff]
    %v31 = vld [vmem:[%s1 + $0x18] sm:$0xff]
    %v32 = vld [vmem:[%s1 + $0x20] sm:$0xff]
    %v33 = vld [vmem:[%s1 + $0x28] sm:$0xff]
    %v34 = vld [vmem:[%s1 + $0x30] sm:$0xff]
    %v35 = vld [vmem:[%s1 + $0x38] sm:$0xff]
    %37 = vset.pattern.permute.xlu0 0
    %38 = vperm.xlu0 %37, %v28
    %v39 = vpop.permute.xlu0 %38
    %42 = vset.pattern.permute.xlu0 0
    %43 = vperm.xlu0 %42, %v29
    %v44 = vpop.permute.xlu0 %43
    %47 = vset.pattern.permute.xlu0 0
    %48 = vperm.xlu0 %47, %v30
    %v49 = vpop.permute.xlu0 %48
    %52 = vset.pattern.permute.xlu0 0
    %53 = vperm.xlu0 %52, %v31
    %v54 = vpop.permute.xlu0 %53
    %57 = vset.pattern.permute.xlu0 0
    %58 = vperm.xlu0 %57, %v32
    %v59 = vpop.permute.xlu0 %58
    %62 = vset.pattern.permute.xlu0 0
    %63 = vperm.xlu0 %62, %v33
    %v64 = vpop.permute.xlu0 %63
    %67 = vset.pattern.permute.xlu0 0
    %68 = vperm.xlu0 %67, %v34
    %v69 = vpop.permute.xlu0 %68
    %72 = vset.pattern.permute.xlu0 0
    %73 = vperm.xlu0 %72, %v35
    %v74 = vpop.permute.xlu0 %73
    %v76 = vlaneseq
    %v77 = vshrl.u32 %v76, 7
    %v78 = vsub.s32 0, %v77
    %v79 = vrot.slane %v27, %v78
    %v80 = vmul.f32 %v39, %v79
    %v81 = vmul.f32 %v44, %v79
    %v82 = vmul.f32 %v49, %v79
    %v83 = vmul.f32 %v54, %v79
    %v84 = vmul.f32 %v59, %v79
    %v85 = vmul.f32 %v64, %v79
    %v86 = vmul.f32 %v69, %v79
    %v87 = vmul.f32 %v74, %v79
    %88 = vset.pattern.permute.xlu0 1
    %89 = vperm.xlu0 %88, %v28
    %v90 = vpop.permute.xlu0 %89
    %92 = vset.pattern.permute.xlu0 1
    %93 = vperm.xlu0 %92, %v29
    %v94 = vpop.permute.xlu0 %93
    %96 = vset.pattern.permute.xlu0 1
    %97 = vperm.xlu0 %96, %v30
    %v98 = vpop.permute.xlu0 %97
    %100 = vset.pattern.permute.xlu0 1
    %101 = vperm.xlu0 %100, %v31
    %v102 = vpop.permute.xlu0 %101
    %104 = vset.pattern.permute.xlu0 1
    %105 = vperm.xlu0 %104, %v32
    %v106 = vpop.permute.xlu0 %105
    %108 = vset.pattern.permute.xlu0 1
    %109 = vperm.xlu0 %108, %v33
    %v110 = vpop.permute.xlu0 %109
    %112 = vset.pattern.permute.xlu0 1
    %113 = vperm.xlu0 %112, %v34
    %v114 = vpop.permute.xlu0 %113
    %116 = vset.pattern.permute.xlu0 1
    %117 = vperm.xlu0 %116, %v35
    %v118 = vpop.permute.xlu0 %117
    %v120 = vlaneseq
    %v121 = vshrl.u32 %v120, 7
    %v122 = vsub.s32 1, %v121
    %v123 = vrot.slane %v27, %v122
    %v124 = vmul.f32 %v90, %v123
    %v125 = vmul.f32 %v94, %v123
    %v126 = vmul.f32 %v98, %v123
    %v127 = vmul.f32 %v102, %v123
    %v128 = vmul.f32 %v106, %v123
    %v129 = vmul.f32 %v110, %v123
    %v130 = vmul.f32 %v114, %v123
    %v131 = vmul.f32 %v118, %v123
    %v132 = vadd.f32 %v80, %v124
    %v133 = vadd.f32 %v81, %v125
    %v134 = vadd.f32 %v82, %v126
    %v135 = vadd.f32 %v83, %v127
    %v136 = vadd.f32 %v84, %v128
    %v137 = vadd.f32 %v85, %v129
    %v138 = vadd.f32 %v86, %v130
    %v139 = vadd.f32 %v87, %v131
    %v140 = vld [vmem:[%s2] sm:$0xff]
    %v141 = vld [vmem:[%s2 + $0x8] sm:$0xff]
    %v142 = vld [vmem:[%s2 + $0x10] sm:$0xff]
    %v143 = vld [vmem:[%s2 + $0x18] sm:$0xff]
    %v144 = vld [vmem:[%s2 + $0x20] sm:$0xff]
    %v145 = vld [vmem:[%s2 + $0x28] sm:$0xff]
    %v146 = vld [vmem:[%s2 + $0x30] sm:$0xff]
    %v147 = vld [vmem:[%s2 + $0x38] sm:$0xff]
    %149 = vset.pattern.permute.xlu0 0
    %150 = vperm.xlu0 %149, %v140
    %v151 = vpop.permute.xlu0 %150
    %154 = vset.pattern.permute.xlu0 0
    %155 = vperm.xlu0 %154, %v141
    %v156 = vpop.permute.xlu0 %155
    %159 = vset.pattern.permute.xlu0 0
    %160 = vperm.xlu0 %159, %v142
    %v161 = vpop.permute.xlu0 %160
    %164 = vset.pattern.permute.xlu0 0
    %165 = vperm.xlu0 %164, %v143
    %v166 = vpop.permute.xlu0 %165
    %169 = vset.pattern.permute.xlu0 0
    %170 = vperm.xlu0 %169, %v144
    %v171 = vpop.permute.xlu0 %170
    %174 = vset.pattern.permute.xlu0 0
    %175 = vperm.xlu0 %174, %v145
    %v176 = vpop.permute.xlu0 %175
    %179 = vset.pattern.permute.xlu0 0
    %180 = vperm.xlu0 %179, %v146
    %v181 = vpop.permute.xlu0 %180
    %184 = vset.pattern.permute.xlu0 0
    %185 = vperm.xlu0 %184, %v147
    %v186 = vpop.permute.xlu0 %185
    %v188 = vadd.f32 %v132, %v151
    %v189 = vadd.f32 %v133, %v156
    %v190 = vadd.f32 %v134, %v161
    %v191 = vadd.f32 %v135, %v166
    %v192 = vadd.f32 %v136, %v171
    %v193 = vadd.f32 %v137, %v176
    %v194 = vadd.f32 %v138, %v181
    %v195 = vadd.f32 %v139, %v186
    %v196 = vmax.f32 %v188, 0.0
    %v197 = vmax.f32 %v189, 0.0
    %v198 = vmax.f32 %v190, 0.0
    %v199 = vmax.f32 %v191, 0.0
    %v200 = vmax.f32 %v192, 0.0
    %v201 = vmax.f32 %v193, 0.0
    %v202 = vmax.f32 %v194, 0.0
    %v203 = vmax.f32 %v195, 0.0
    %v204 = vld [vmem:[%s3] sm:$0xff]
    %v205 = vld [vmem:[%s3 + $0x8] sm:$0xff]
    %v206 = vld [vmem:[%s3 + $0x10] sm:$0xff]
    %v207 = vld [vmem:[%s3 + $0x18] sm:$0xff]
    %v208 = vld [vmem:[%s5] sm:$0x3]
    %v209 = vld [vmem:[%s4] sm:$0xff]
    %v210 = vld [vmem:[%s4 + $0x8] sm:$0xff]
    %v211 = vld [vmem:[%s4 + $0x10] sm:$0xff]
    %v212 = vld [vmem:[%s4 + $0x18] sm:$0xff]
    %214 = vset.pattern.permute.xlu0 0
    %215 = vperm.xlu0 %214, %v209
    %v216 = vpop.permute.xlu0 %215
    %219 = vset.pattern.permute.xlu0 0
    %220 = vperm.xlu0 %219, %v210
    %v221 = vpop.permute.xlu0 %220
    %224 = vset.pattern.permute.xlu0 0
    %225 = vperm.xlu0 %224, %v211
    %v226 = vpop.permute.xlu0 %225
    %229 = vset.pattern.permute.xlu0 0
    %230 = vperm.xlu0 %229, %v212
    %v231 = vpop.permute.xlu0 %230
    %vm233 = vcmask 523264
    %v235 = vsel %vm233, %v204, 0
    %v238 = vsel %vm233, %v205, 0
    %v241 = vsel %vm233, %v206, 0
    %v244 = vsel %vm233, %v207, 0
    %246 = vmatprep.subr.mxu0 0.0
    %247 = vmatpush1.msra.mxu0 %v196
    %248 = vmatprep.subr.mxu0 0.0
    %249 = vmatpush1.msra.mxu0 %v197
    %250 = vmatprep.subr.mxu0 0.0
    %251 = vmatpush1.msra.mxu0 %v198
    %252 = vmatprep.subr.mxu0 0.0
    %253 = vmatpush1.msra.mxu0 %v199
    %254 = vmatprep.subr.mxu0 0.0
    %255 = vmatpush1.msra.mxu0 %v200
    %256 = vmatprep.subr.mxu0 0.0
    %257 = vmatpush1.msra.mxu0 %v201
    %258 = vmatprep.subr.mxu0 0.0
    %259 = vmatpush1.msra.mxu0 %v202
    %260 = vmatprep.subr.mxu0 0.0
    %261 = vmatpush1.msra.mxu0 %v203
    %262 = vmatprep.subr.mxu0 0.0
    %263 = vmatpush1.msra.mxu0 0.0
    %264 = vmatprep.subr.mxu0 0.0
    %265 = vmatpush1.msra.mxu0 0.0
    %266 = vmatprep.subr.mxu0 0.0
    %267 = vmatpush1.msra.mxu0 0.0
    %268 = vmatprep.subr.mxu0 0.0
    %269 = vmatpush1.msra.mxu0 0.0
    %270 = vmatprep.subr.mxu0 0.0
    %271 = vmatpush1.msra.mxu0 0.0
    %272 = vmatprep.subr.mxu0 0.0
    %273 = vmatpush1.msra.mxu0 0.0
    %274 = vmatprep.subr.mxu0 0.0
    %275 = vmatpush1.msra.mxu0 0.0
    %276 = vmatprep.subr.mxu0 0.0
    %277 = vmatpush1.msra.mxu0 0.0
    %278 = vmatprep.subr.mxu0 0.0
    %279 = vmatpush1.msra.mxu0 0.0
    %280 = vmatprep.subr.mxu0 0.0
    %281 = vmatpush1.msra.mxu0 0.0
    %282 = vmatprep.subr.mxu0 0.0
    %283 = vmatpush1.msra.mxu0 0.0
    %284 = vmatprep.subr.mxu0 0.0
    %285 = vmatpush1.msra.mxu0 0.0
    %286 = vmatprep.subr.mxu0 0.0
    %287 = vmatpush1.msra.mxu0 0.0
    %288 = vmatprep.subr.mxu0 0.0
    %289 = vmatpush1.msra.mxu0 0.0
    %290 = vmatprep.subr.mxu0 0.0
    %291 = vmatpush1.msra.mxu0 0.0
    %292 = vmatprep.subr.mxu0 0.0
    %293 = vmatpush1.msra.mxu0 0.0
    %294 = vmatprep.subr.mxu0 0.0
    %295 = vmatpush1.msra.mxu0 0.0
    %296 = vmatprep.subr.mxu0 0.0
    %297 = vmatpush1.msra.mxu0 0.0
    %298 = vmatprep.subr.mxu0 0.0
    %299 = vmatpush1.msra.mxu0 0.0
    %300 = vmatprep.subr.mxu0 0.0
    %301 = vmatpush1.msra.mxu0 0.0
    %302 = vmatprep.subr.mxu0 0.0
    %303 = vmatpush1.msra.mxu0 0.0
    %304 = vmatprep.subr.mxu0 0.0
    %305 = vmatpush1.msra.mxu0 0.0
    %306 = vmatprep.subr.mxu0 0.0
    %307 = vmatpush1.msra.mxu0 0.0
    %308 = vmatprep.subr.mxu0 0.0
    %309 = vmatpush1.msra.mxu0 0.0
    %310 = vmatprep.mubr.f32.mxu0 0.0
    %311 = vmatmul.mubr.f32.gmra.mrb[0].mxu0 %v235
    %v312 = vpop.f32.mrb[0].mxu0
    %v313 = vadd.f32 %v216, %v312
    %v314 = vpop.f32.mrb[0].mxu0
    %315 = vmatprep.mubr.f32.mxu0 0.0
    %316 = vmatmul.mubr.f32.gmra.mrb[0].mxu0 %v238
    %v317 = vpop.f32.mrb[0].mxu0
    %v318 = vadd.f32 %v221, %v317
    %v319 = vpop.f32.mrb[0].mxu0
    %320 = vmatprep.mubr.f32.mxu0 0.0
    %321 = vmatmul.mubr.f32.gmra.mrb[0].mxu0 %v241
    %v322 = vpop.f32.mrb[0].mxu0
    %v323 = vadd.f32 %v226, %v322
    %v324 = vpop.f32.mrb[0].mxu0
    %325 = vmatprep.mubr.f32.mxu0 0.0
    %326 = vmatmul.mubr.f32.gmra.mrb[0].mxu0 %v244
    %v327 = vpop.f32.mrb[0].mxu0
    %v328 = vadd.f32 %v231, %v327
    %v329 = vpop.f32.mrb[0].mxu0
    %330 = vdwg.mxu0
    %v331 = vmax.f32 %v313, 0.0
    %v332 = vmax.f32 %v318, 0.0
    %v333 = vmax.f32 %v323, 0.0
    %v334 = vmax.f32 %v328, 0.0
    %v335 = vld [vmem:[%s6] sm:$0x3]
    %337 = vset.pattern.permute.xlu0 0
    %338 = vperm.xlu0 %337, %v335
    %v339 = vpop.permute.xlu0 %338
    %vm341 = vcmask 261120
    %v343 = vsel %vm341, %v208, 0
    %345 = vmatprep.subr.mxu0 0.0
    %346 = vmatpush1.msra.mxu0 %v331
    %347 = vmatprep.subr.mxu0 0.0
    %348 = vmatpush1.msra.mxu0 %v332
    %349 = vmatprep.subr.mxu0 0.0
    %350 = vmatpush1.msra.mxu0 %v333
    %351 = vmatprep.subr.mxu0 0.0
    %352 = vmatpush1.msra.mxu0 %v334
    %353 = vmatprep.subr.mxu0 0.0
    %354 = vmatpush1.msra.mxu0 0.0
    %355 = vmatprep.subr.mxu0 0.0
    %356 = vmatpush1.msra.mxu0 0.0
    %357 = vmatprep.subr.mxu0 0.0
    %358 = vmatpush1.msra.mxu0 0.0
    %359 = vmatprep.subr.mxu0 0.0
    %360 = vmatpush1.msra.mxu0 0.0
    %361 = vmatprep.subr.mxu0 0.0
    %362 = vmatpush1.msra.mxu0 0.0
    %363 = vmatprep.subr.mxu0 0.0
    %364 = vmatpush1.msra.mxu0 0.0
    %365 = vmatprep.subr.mxu0 0.0
    %366 = vmatpush1.msra.mxu0 0.0
    %367 = vmatprep.subr.mxu0 0.0
    %368 = vmatpush1.msra.mxu0 0.0
    %369 = vmatprep.subr.mxu0 0.0
    %370 = vmatpush1.msra.mxu0 0.0
    %371 = vmatprep.subr.mxu0 0.0
    %372 = vmatpush1.msra.mxu0 0.0
    %373 = vmatprep.subr.mxu0 0.0
    %374 = vmatpush1.msra.mxu0 0.0
    %375 = vmatprep.subr.mxu0 0.0
    %376 = vmatpush1.msra.mxu0 0.0
    %377 = vmatprep.subr.mxu0 0.0
    %378 = vmatpush1.msra.mxu0 0.0
    %379 = vmatprep.subr.mxu0 0.0
    %380 = vmatpush1.msra.mxu0 0.0
    %381 = vmatprep.subr.mxu0 0.0
    %382 = vmatpush1.msra.mxu0 0.0
    %383 = vmatprep.subr.mxu0 0.0
    %384 = vmatpush1.msra.mxu0 0.0
    %385 = vmatprep.subr.mxu0 0.0
    %386 = vmatpush1.msra.mxu0 0.0
    %387 = vmatprep.subr.mxu0 0.0
    %388 = vmatpush1.msra.mxu0 0.0
    %389 = vmatprep.subr.mxu0 0.0
    %390 = vmatpush1.msra.mxu0 0.0
    %391 = vmatprep.subr.mxu0 0.0
    %392 = vmatpush1.msra.mxu0 0.0
    %393 = vmatprep.subr.mxu0 0.0
    %394 = vmatpush1.msra.mxu0 0.0
    %395 = vmatprep.subr.mxu0 0.0
    %396 = vmatpush1.msra.mxu0 0.0
    %397 = vmatprep.subr.mxu0 0.0
    %398 = vmatpush1.msra.mxu0 0.0
    %399 = vmatprep.subr.mxu0 0.0
    %400 = vmatpush1.msra.mxu0 0.0
    %401 = vmatprep.subr.mxu0 0.0
    %402 = vmatpush1.msra.mxu0 0.0
    %403 = vmatprep.subr.mxu0 0.0
    %404 = vmatpush1.msra.mxu0 0.0
    %405 = vmatprep.subr.mxu0 0.0
    %406 = vmatpush1.msra.mxu0 0.0
    %407 = vmatprep.subr.mxu0 0.0
    %408 = vmatpush1.msra.mxu0 0.0
    %409 = vmatprep.mubr.f32.mxu0 0.0
    %410 = vmatmul.mubr.f32.gmra.mrb[0].mxu0 %v343
    %v411 = vpop.f32.mrb[0].mxu0
    %v412 = vadd.f32 %v339, %v411
    %v413 = vpop.f32.mrb[0].mxu0
    %414 = vdwg.mxu0
    %v415 = vsub.f32 0.0, %v412
    %v416 = vmul.f32 %v415, 1.442695
    %v417 = vpow.pop %v416
    %v418 = vadd.f32 %v417, 1.0
    %v419 = vrcp.pop %v418
    %v420 = vmul.f32 1.0, %v419
    %421 = vst [vmem:[#allocation2] sm:$0x3] %v420
    // Predicated region
    $region30: #{_mlp_forward_impl.1} parent=1 // pred_check
      _
    $region31: #{_mlp_forward_impl.1} parent=1 // pred_check_branch
      %423 = sbr.rel (0) target = $region33
    $region32: #{_mlp_forward_impl.1} parent=1 // pred_region
      %s425 = ssub.s32 32, 32
      %426 = vsyncadd [#allocation3], %s425
      %s428 = sshll.u32 [#allocation2], 4
      %s429 = int_to_ptr.vmem [resolvable:$true] %s428
      %431 = dma.vmem_to_hbm [thread:$0]  %s429, 32, %s7, [#allocation3]
    $region33: #{_mlp_forward_impl.1} parent=1 // pred_fallthru
      _
    // Predicated region
    $region34: #{_mlp_forward_impl.1} parent=1 // pred_check
      _
    $region35: #{_mlp_forward_impl.1} parent=1 // pred_check_branch
      %433 = sbr.rel (0) target = $region37
    $region36: #{_mlp_forward_impl.1} parent=1 // pred_region
      %434 = dma.done [#allocation3], 32
    $region37: #{_mlp_forward_impl.1} parent=1 // pred_fallthru
      _
    %435 = vsyncpa [#allocation3], 1

</llo_original>
